<compile_context>
chip_gen: v7x
topology: tpu7x:2x2x1
jax: 0.10.0
libtpu: 0.0.40
codegen_flags: <defaults>
</compile_context>

<pallas_src>
import jax
import jax.numpy as jnp
from jax import lax
from jax.experimental import pallas as pl
from jax.experimental.pallas import tpu as pltpu


def _lstm_kernel(x_ref, w_ref, u_ref, b_ref, y_ref):
    B, T, I = x_ref.shape
    H = y_ref.shape[1]
    H4 = 4 * H

    w = w_ref[...]          # (I, 4H)  bf16, gate order [f, i, o, c] along lanes
    u = u_ref[...]          # (H, 4H)  bf16
    b = b_ref[...]          # (1, 4H)  f32 fused bias (w_g.bias + u_g.bias + extra b_g)

    # ---- Hoisted input projection (independent of the recurrence) ----------
    # One (B*T, I) x (I, 4H) MXU pass + one bias add, instead of T small
    # matmuls + T bias broadcasts on the serial h->h critical path.
    x2d = x_ref[...].reshape(B * T, I).astype(jnp.bfloat16)
    xw = jnp.dot(x2d, w, preferred_element_type=jnp.float32) + b    # (B*T, 4H) f32
    xw = xw.reshape(B, T, H4)

    # ---- Hoisted per-lane constants for the fused activation ---------------
    # Lanes [0, 3H): sigmoid gates f/i/o.  Lanes [3H, 4H): candidate cell,
    # computed as tanh(z) = 2*sigmoid(2*z) - 1 so only ONE EUP op per step.
    lane = lax.broadcasted_iota(jnp.int32, (B, H4), dimension=1)
    is_c_gate = lane >= 3 * H
    scale = jnp.where(is_c_gate, 2.0, 1.0).astype(jnp.float32)      # (B, 4H)
    offset = jnp.where(is_c_gate, -1.0, 0.0).astype(jnp.float32)    # (B, 4H)

    h = jnp.zeros((B, H), jnp.float32)
    c = jnp.zeros((B, H), jnp.float32)

    # T is small and static: fully unrolled loop, h/c live in vregs, and the
    # LLO scheduler sees the whole recurrence.
    for t in range(T):
        z = xw[:, t, :] + jnp.dot(h.astype(jnp.bfloat16), u,
                                  preferred_element_type=jnp.float32)   # (B, 4H)
        s = jax.nn.sigmoid(z * scale)        # single transcendental on 4H lanes
        g = s * scale + offset               # f/i/o = sigmoid(z), c_bar = tanh(z)
        f_t = g[:, 0 * H:1 * H]
        i_t = g[:, 1 * H:2 * H]
        o_t = g[:, 2 * H:3 * H]
        c_bar = g[:, 3 * H:4 * H]
        c = f_t * c + i_t * c_bar
        h = o_t * jnp.tanh(c)

    # Single store of the final hidden state (many-to-one output).
    y_ref[...] = h


def many_to_one_lstm(x_bti, w_packed, u_packed, b_packed):
    """x_bti: (B, T, I) torch-layout input, float32.

    w_packed: (I, 4H), u_packed: (H, 4H) — stored bf16 for single-pass MXU.
    b_packed: (1, 4H) float32 fused bias.  Gate order [f, i, o, c].
    Returns the last hidden state h_T of shape (B, H), float32.
    """
    B, _, _ = x_bti.shape
    H = u_packed.shape[0]

    return pl.pallas_call(
        _lstm_kernel,
        out_shape=jax.ShapeDtypeStruct((B, H), jnp.float32),
        in_specs=[
            pl.BlockSpec(memory_space=pltpu.MemorySpace.VMEM),   # x   (B, T, I) f32
            pl.BlockSpec(memory_space=pltpu.MemorySpace.VMEM),   # W   (I, 4H)  bf16
            pl.BlockSpec(memory_space=pltpu.MemorySpace.VMEM),   # U   (H, 4H)  bf16
            pl.BlockSpec(memory_space=pltpu.MemorySpace.VMEM),   # b   (1, 4H)  f32
        ],
        out_specs=pl.BlockSpec(memory_space=pltpu.MemorySpace.VMEM),
        compiler_params=pltpu.CompilerParams(
            # Tiny footprint here; explicit limit keeps this safe on v7x
            # (64 MiB physical VMEM) if shapes are ever scaled up.  If B*T*I
            # ever grows to MiB scale, tile x over T via a BlockSpec grid
            # instead of whole-array VMEM residency.
            vmem_limit_bytes=32 * 1024 * 1024,
        ),
    )(x_bti, w_packed.astype(jnp.bfloat16), u_packed.astype(jnp.bfloat16),
      b_packed)


def _reference_lstm(x_bti, w_g, u_g, b_g):
    """Pure-JAX f32 reference mirroring the PyTorch forward (per-gate weights)."""
    B, T, _ = x_bti.shape
    H = w_g.shape[-1]
    h = jnp.zeros((B, H), jnp.float32)
    c = jnp.zeros((B, H), jnp.float32)
    for t in range(T):
        x_t = x_bti[:, t, :]
        f = jax.nn.sigmoid(x_t @ w_g[0] + h @ u_g[0] + b_g[0])
        i = jax.nn.sigmoid(x_t @ w_g[1] + h @ u_g[1] + b_g[1])
        o = jax.nn.sigmoid(x_t @ w_g[2] + h @ u_g[2] + b_g[2])
        cb = jnp.tanh(x_t @ w_g[3] + h @ u_g[3] + b_g[3])
        c = f * c + i * cb
        h = o * jnp.tanh(c)
    return h


if __name__ == "__main__":
    # Small shapes consistent with the module: batch=2, input_times=8,
    # input_size=16, output_size(hidden)=32 -> 4H = 128 (one vreg lane width).
    B, T, I, H = 2, 8, 16, 32

    key = jax.random.PRNGKey(0)
    kx, kw, ku, kbw, kbu = jax.random.split(key, 5)

    x = jax.random.normal(kx, (B, T, I), dtype=jnp.float32)

    # Deterministic synthetic parameters. Gate order: [f, i, o, c].
    # w_g[g] corresponds to torch w_g.weight.T (I, H); u_g[g] to u_g.weight.T (H, H).
    w_g = 0.1 * jax.random.normal(kw, (4, I, H), dtype=jnp.float32)
    u_g = 0.1 * jax.random.normal(ku, (4, H, H), dtype=jnp.float32)
    # nn.Linear biases of w_g and u_g summed; extra b_g == 0 (bias=False default).
    b_g = (0.1 * jax.random.normal(kbw, (4, 1, H), dtype=jnp.float32)
           + 0.1 * jax.random.normal(kbu, (4, 1, H), dtype=jnp.float32))

    # Pack weights for the fused-gate kernel: last axis = [f | i | o | c].
    w_packed = jnp.concatenate([w_g[g] for g in range(4)], axis=-1)   # (I, 4H)
    u_packed = jnp.concatenate([u_g[g] for g in range(4)], axis=-1)   # (H, 4H)
    b_packed = jnp.concatenate([b_g[g] for g in range(4)], axis=-1)   # (1, 4H)

    y = many_to_one_lstm(x, w_packed, u_packed, b_packed)
    y = jax.block_until_ready(y)

    y_ref = _reference_lstm(x, w_g, u_g, b_g)
    assert y.shape == (B, H)
    # Tolerance deliberately loosened vs the f32 reference: the kernel feeds
    # bf16 operands to the MXU (f32 accumulation) per the performance review.
    assert jnp.allclose(y, y_ref, atol=3e-2, rtol=3e-2), "mismatch vs reference"

    print("KERNEL_OK")
</pallas_src>

<mosaic_0001>
module attributes {stable_mosaic.version = 11 : i64} {
  func.func @_lstm_kernel(%arg0: memref<2x8x16xf32, #tpu.memory_space<vmem>>, %arg1: memref<16x128xbf16, #tpu.memory_space<vmem>>, %arg2: memref<32x128xbf16, #tpu.memory_space<vmem>>, %arg3: memref<1x128xf32, #tpu.memory_space<vmem>>, %arg4: memref<2x32xf32, #tpu.memory_space<vmem>>) attributes {dimension_semantics = [], scalar_prefetch = 0 : i64, scratch_operands = 0 : i64, tpu.core_type = #tpu.core_type<tc>} {
    %c0 = arith.constant 0 : index
    %c0_0 = arith.constant 0 : index
    %0 = vector.load %arg1[%c0, %c0_0] : memref<16x128xbf16, #tpu.memory_space<vmem>>, vector<16x128xbf16>
    %c0_1 = arith.constant 0 : index
    %c0_2 = arith.constant 0 : index
    %1 = vector.load %arg2[%c0_1, %c0_2] : memref<32x128xbf16, #tpu.memory_space<vmem>>, vector<32x128xbf16>
    %c0_3 = arith.constant 0 : index
    %c0_4 = arith.constant 0 : index
    %2 = vector.load %arg3[%c0_3, %c0_4] : memref<1x128xf32, #tpu.memory_space<vmem>>, vector<1x128xf32>
    %c0_5 = arith.constant 0 : index
    %c0_6 = arith.constant 0 : index
    %c0_7 = arith.constant 0 : index
    %3 = vector.load %arg0[%c0_5, %c0_6, %c0_7] : memref<2x8x16xf32, #tpu.memory_space<vmem>>, vector<2x8x16xf32>
    %4 = vector.shape_cast %3 : vector<2x8x16xf32> to vector<16x16xf32>
    %5 = arith.truncf %4 : vector<16x16xf32> to vector<16x16xbf16>
    %cst = arith.constant dense<0.000000e+00> : vector<16x128xf32>
    %6 = tpu.matmul %5, %0, %cst {dimension_numbers = #tpu.dot_dimension_numbers<[1], [0], [0], [1], [0, 0, 1, 1], [], []>} : vector<16x16xbf16>, vector<16x128xbf16>, vector<16x128xf32> -> vector<16x128xf32>
    %7 = vector.broadcast %2 : vector<1x128xf32> to vector<16x128xf32>
    %8 = arith.addf %6, %7 : vector<16x128xf32>
    %9 = vector.shape_cast %8 : vector<16x128xf32> to vector<2x8x128xf32>
    %10 = tpu.iota {dimensions = array<i32: 1>} : vector<2x128xi32>
    %c96_i32 = arith.constant 96 : i32
    %11 = vector.broadcast %c96_i32 : i32 to vector<2x128xi32>
    %12 = arith.cmpi sge, %10, %11 : vector<2x128xi32>
    %cst_8 = arith.constant 2.000000e+00 : f32
    %cst_9 = arith.constant 1.000000e+00 : f32
    %13 = vector.broadcast %cst_8 : f32 to vector<2x128xf32>
    %14 = vector.broadcast %cst_9 : f32 to vector<2x128xf32>
    %15 = arith.select %12, %13, %14 : vector<2x128xi1>, vector<2x128xf32>
    %cst_10 = arith.constant -1.000000e+00 : f32
    %cst_11 = arith.constant 0.000000e+00 : f32
    %16 = vector.broadcast %cst_10 : f32 to vector<2x128xf32>
    %17 = vector.broadcast %cst_11 : f32 to vector<2x128xf32>
    %18 = arith.select %12, %16, %17 : vector<2x128xi1>, vector<2x128xf32>
    %cst_12 = arith.constant 0.000000e+00 : f32
    %19 = vector.broadcast %cst_12 : f32 to vector<2x32xf32>
    %cst_13 = arith.constant 0.000000e+00 : f32
    %20 = vector.broadcast %cst_13 : f32 to vector<2x32xf32>
    %21 = vector.extract_strided_slice %9 {offsets = [0, 0, 0], sizes = [2, 1, 128], strides = [1, 1, 1]} : vector<2x8x128xf32> to vector<2x1x128xf32>
    %22 = vector.shape_cast %21 : vector<2x1x128xf32> to vector<2x128xf32>
    %23 = arith.truncf %19 : vector<2x32xf32> to vector<2x32xbf16>
    %cst_14 = arith.constant dense<0.000000e+00> : vector<2x128xf32>
    %24 = tpu.matmul %23, %1, %cst_14 {dimension_numbers = #tpu.dot_dimension_numbers<[1], [0], [0], [1], [0, 0, 1, 1], [], []>} : vector<2x32xbf16>, vector<32x128xbf16>, vector<2x128xf32> -> vector<2x128xf32>
    %25 = arith.addf %22, %24 : vector<2x128xf32>
    %26 = arith.mulf %25, %15 : vector<2x128xf32>
    %27 = arith.negf %26 : vector<2x128xf32>
    %28 = math.exp %27 : vector<2x128xf32>
    %cst_15 = arith.constant 1.000000e+00 : f32
    %29 = vector.broadcast %cst_15 : f32 to vector<2x128xf32>
    %30 = arith.addf %29, %28 : vector<2x128xf32>
    %31 = arith.divf %29, %30 : vector<2x128xf32>
    %32 = arith.mulf %31, %15 : vector<2x128xf32>
    %33 = arith.addf %32, %18 : vector<2x128xf32>
    %34 = vector.extract_strided_slice %33 {offsets = [0, 0], sizes = [2, 32], strides = [1, 1]} : vector<2x128xf32> to vector<2x32xf32>
    %35 = vector.extract_strided_slice %33 {offsets = [0, 32], sizes = [2, 32], strides = [1, 1]} : vector<2x128xf32> to vector<2x32xf32>
    %36 = vector.extract_strided_slice %33 {offsets = [0, 64], sizes = [2, 32], strides = [1, 1]} : vector<2x128xf32> to vector<2x32xf32>
    %37 = vector.extract_strided_slice %33 {offsets = [0, 96], sizes = [2, 32], strides = [1, 1]} : vector<2x128xf32> to vector<2x32xf32>
    %38 = arith.mulf %34, %20 : vector<2x32xf32>
    %39 = arith.mulf %35, %37 : vector<2x32xf32>
    %40 = arith.addf %38, %39 : vector<2x32xf32>
    %41 = math.tanh %40 : vector<2x32xf32>
    %42 = arith.mulf %36, %41 : vector<2x32xf32>
    %43 = vector.extract_strided_slice %9 {offsets = [0, 1, 0], sizes = [2, 1, 128], strides = [1, 1, 1]} : vector<2x8x128xf32> to vector<2x1x128xf32>
    %44 = vector.shape_cast %43 : vector<2x1x128xf32> to vector<2x128xf32>
    %45 = arith.truncf %42 : vector<2x32xf32> to vector<2x32xbf16>
    %cst_16 = arith.constant dense<0.000000e+00> : vector<2x128xf32>
    %46 = tpu.matmul %45, %1, %cst_16 {dimension_numbers = #tpu.dot_dimension_numbers<[1], [0], [0], [1], [0, 0, 1, 1], [], []>} : vector<2x32xbf16>, vector<32x128xbf16>, vector<2x128xf32> -> vector<2x128xf32>
    %47 = arith.addf %44, %46 : vector<2x128xf32>
    %48 = arith.mulf %47, %15 : vector<2x128xf32>
    %49 = arith.negf %48 : vector<2x128xf32>
    %50 = math.exp %49 : vector<2x128xf32>
    %cst_17 = arith.constant 1.000000e+00 : f32
    %51 = vector.broadcast %cst_17 : f32 to vector<2x128xf32>
    %52 = arith.addf %51, %50 : vector<2x128xf32>
    %53 = arith.divf %51, %52 : vector<2x128xf32>
    %54 = arith.mulf %53, %15 : vector<2x128xf32>
    %55 = arith.addf %54, %18 : vector<2x128xf32>
    %56 = vector.extract_strided_slice %55 {offsets = [0, 0], sizes = [2, 32], strides = [1, 1]} : vector<2x128xf32> to vector<2x32xf32>
    %57 = vector.extract_strided_slice %55 {offsets = [0, 32], sizes = [2, 32], strides = [1, 1]} : vector<2x128xf32> to vector<2x32xf32>
    %58 = vector.extract_strided_slice %55 {offsets = [0, 64], sizes = [2, 32], strides = [1, 1]} : vector<2x128xf32> to vector<2x32xf32>
    %59 = vector.extract_strided_slice %55 {offsets = [0, 96], sizes = [2, 32], strides = [1, 1]} : vector<2x128xf32> to vector<2x32xf32>
    %60 = arith.mulf %56, %40 : vector<2x32xf32>
    %61 = arith.mulf %57, %59 : vector<2x32xf32>
    %62 = arith.addf %60, %61 : vector<2x32xf32>
    %63 = math.tanh %62 : vector<2x32xf32>
    %64 = arith.mulf %58, %63 : vector<2x32xf32>
    %65 = vector.extract_strided_slice %9 {offsets = [0, 2, 0], sizes = [2, 1, 128], strides = [1, 1, 1]} : vector<2x8x128xf32> to vector<2x1x128xf32>
    %66 = vector.shape_cast %65 : vector<2x1x128xf32> to vector<2x128xf32>
    %67 = arith.truncf %64 : vector<2x32xf32> to vector<2x32xbf16>
    %cst_18 = arith.constant dense<0.000000e+00> : vector<2x128xf32>
    %68 = tpu.matmul %67, %1, %cst_18 {dimension_numbers = #tpu.dot_dimension_numbers<[1], [0], [0], [1], [0, 0, 1, 1], [], []>} : vector<2x32xbf16>, vector<32x128xbf16>, vector<2x128xf32> -> vector<2x128xf32>
    %69 = arith.addf %66, %68 : vector<2x128xf32>
    %70 = arith.mulf %69, %15 : vector<2x128xf32>
    %71 = arith.negf %70 : vector<2x128xf32>
    %72 = math.exp %71 : vector<2x128xf32>
    %cst_19 = arith.constant 1.000000e+00 : f32
    %73 = vector.broadcast %cst_19 : f32 to vector<2x128xf32>
    %74 = arith.addf %73, %72 : vector<2x128xf32>
    %75 = arith.divf %73, %74 : vector<2x128xf32>
    %76 = arith.mulf %75, %15 : vector<2x128xf32>
    %77 = arith.addf %76, %18 : vector<2x128xf32>
    %78 = vector.extract_strided_slice %77 {offsets = [0, 0], sizes = [2, 32], strides = [1, 1]} : vector<2x128xf32> to vector<2x32xf32>
    %79 = vector.extract_strided_slice %77 {offsets = [0, 32], sizes = [2, 32], strides = [1, 1]} : vector<2x128xf32> to vector<2x32xf32>
    %80 = vector.extract_strided_slice %77 {offsets = [0, 64], sizes = [2, 32], strides = [1, 1]} : vector<2x128xf32> to vector<2x32xf32>
    %81 = vector.extract_strided_slice %77 {offsets = [0, 96], sizes = [2, 32], strides = [1, 1]} : vector<2x128xf32> to vector<2x32xf32>
    %82 = arith.mulf %78, %62 : vector<2x32xf32>
    %83 = arith.mulf %79, %81 : vector<2x32xf32>
    %84 = arith.addf %82, %83 : vector<2x32xf32>
    %85 = math.tanh %84 : vector<2x32xf32>
    %86 = arith.mulf %80, %85 : vector<2x32xf32>
    %87 = vector.extract_strided_slice %9 {offsets = [0, 3, 0], sizes = [2, 1, 128], strides = [1, 1, 1]} : vector<2x8x128xf32> to vector<2x1x128xf32>
    %88 = vector.shape_cast %87 : vector<2x1x128xf32> to vector<2x128xf32>
    %89 = arith.truncf %86 : vector<2x32xf32> to vector<2x32xbf16>
    %cst_20 = arith.constant dense<0.000000e+00> : vector<2x128xf32>
    %90 = tpu.matmul %89, %1, %cst_20 {dimension_numbers = #tpu.dot_dimension_numbers<[1], [0], [0], [1], [0, 0, 1, 1], [], []>} : vector<2x32xbf16>, vector<32x128xbf16>, vector<2x128xf32> -> vector<2x128xf32>
    %91 = arith.addf %88, %90 : vector<2x128xf32>
    %92 = arith.mulf %91, %15 : vector<2x128xf32>
    %93 = arith.negf %92 : vector<2x128xf32>
    %94 = math.exp %93 : vector<2x128xf32>
    %cst_21 = arith.constant 1.000000e+00 : f32
    %95 = vector.broadcast %cst_21 : f32 to vector<2x128xf32>
    %96 = arith.addf %95, %94 : vector<2x128xf32>
    %97 = arith.divf %95, %96 : vector<2x128xf32>
    %98 = arith.mulf %97, %15 : vector<2x128xf32>
    %99 = arith.addf %98, %18 : vector<2x128xf32>
    %100 = vector.extract_strided_slice %99 {offsets = [0, 0], sizes = [2, 32], strides = [1, 1]} : vector<2x128xf32> to vector<2x32xf32>
    %101 = vector.extract_strided_slice %99 {offsets = [0, 32], sizes = [2, 32], strides = [1, 1]} : vector<2x128xf32> to vector<2x32xf32>
    %102 = vector.extract_strided_slice %99 {offsets = [0, 64], sizes = [2, 32], strides = [1, 1]} : vector<2x128xf32> to vector<2x32xf32>
    %103 = vector.extract_strided_slice %99 {offsets = [0, 96], sizes = [2, 32], strides = [1, 1]} : vector<2x128xf32> to vector<2x32xf32>
    %104 = arith.mulf %100, %84 : vector<2x32xf32>
    %105 = arith.mulf %101, %103 : vector<2x32xf32>
    %106 = arith.addf %104, %105 : vector<2x32xf32>
    %107 = math.tanh %106 : vector<2x32xf32>
    %108 = arith.mulf %102, %107 : vector<2x32xf32>
    %109 = vector.extract_strided_slice %9 {offsets = [0, 4, 0], sizes = [2, 1, 128], strides = [1, 1, 1]} : vector<2x8x128xf32> to vector<2x1x128xf32>
    %110 = vector.shape_cast %109 : vector<2x1x128xf32> to vector<2x128xf32>
    %111 = arith.truncf %108 : vector<2x32xf32> to vector<2x32xbf16>
    %cst_22 = arith.constant dense<0.000000e+00> : vector<2x128xf32>
    %112 = tpu.matmul %111, %1, %cst_22 {dimension_numbers = #tpu.dot_dimension_numbers<[1], [0], [0], [1], [0, 0, 1, 1], [], []>} : vector<2x32xbf16>, vector<32x128xbf16>, vector<2x128xf32> -> vector<2x128xf32>
    %113 = arith.addf %110, %112 : vector<2x128xf32>
    %114 = arith.mulf %113, %15 : vector<2x128xf32>
    %115 = arith.negf %114 : vector<2x128xf32>
    %116 = math.exp %115 : vector<2x128xf32>
    %cst_23 = arith.constant 1.000000e+00 : f32
    %117 = vector.broadcast %cst_23 : f32 to vector<2x128xf32>
    %118 = arith.addf %117, %116 : vector<2x128xf32>
    %119 = arith.divf %117, %118 : vector<2x128xf32>
    %120 = arith.mulf %119, %15 : vector<2x128xf32>
    %121 = arith.addf %120, %18 : vector<2x128xf32>
    %122 = vector.extract_strided_slice %121 {offsets = [0, 0], sizes = [2, 32], strides = [1, 1]} : vector<2x128xf32> to vector<2x32xf32>
    %123 = vector.extract_strided_slice %121 {offsets = [0, 32], sizes = [2, 32], strides = [1, 1]} : vector<2x128xf32> to vector<2x32xf32>
    %124 = vector.extract_strided_slice %121 {offsets = [0, 64], sizes = [2, 32], strides = [1, 1]} : vector<2x128xf32> to vector<2x32xf32>
    %125 = vector.extract_strided_slice %121 {offsets = [0, 96], sizes = [2, 32], strides = [1, 1]} : vector<2x128xf32> to vector<2x32xf32>
    %126 = arith.mulf %122, %106 : vector<2x32xf32>
    %127 = arith.mulf %123, %125 : vector<2x32xf32>
    %128 = arith.addf %126, %127 : vector<2x32xf32>
    %129 = math.tanh %128 : vector<2x32xf32>
    %130 = arith.mulf %124, %129 : vector<2x32xf32>
    %131 = vector.extract_strided_slice %9 {offsets = [0, 5, 0], sizes = [2, 1, 128], strides = [1, 1, 1]} : vector<2x8x128xf32> to vector<2x1x128xf32>
    %132 = vector.shape_cast %131 : vector<2x1x128xf32> to vector<2x128xf32>
    %133 = arith.truncf %130 : vector<2x32xf32> to vector<2x32xbf16>
    %cst_24 = arith.constant dense<0.000000e+00> : vector<2x128xf32>
    %134 = tpu.matmul %133, %1, %cst_24 {dimension_numbers = #tpu.dot_dimension_numbers<[1], [0], [0], [1], [0, 0, 1, 1], [], []>} : vector<2x32xbf16>, vector<32x128xbf16>, vector<2x128xf32> -> vector<2x128xf32>
    %135 = arith.addf %132, %134 : vector<2x128xf32>
    %136 = arith.mulf %135, %15 : vector<2x128xf32>
    %137 = arith.negf %136 : vector<2x128xf32>
    %138 = math.exp %137 : vector<2x128xf32>
    %cst_25 = arith.constant 1.000000e+00 : f32
    %139 = vector.broadcast %cst_25 : f32 to vector<2x128xf32>
    %140 = arith.addf %139, %138 : vector<2x128xf32>
    %141 = arith.divf %139, %140 : vector<2x128xf32>
    %142 = arith.mulf %141, %15 : vector<2x128xf32>
    %143 = arith.addf %142, %18 : vector<2x128xf32>
    %144 = vector.extract_strided_slice %143 {offsets = [0, 0], sizes = [2, 32], strides = [1, 1]} : vector<2x128xf32> to vector<2x32xf32>
    %145 = vector.extract_strided_slice %143 {offsets = [0, 32], sizes = [2, 32], strides = [1, 1]} : vector<2x128xf32> to vector<2x32xf32>
    %146 = vector.extract_strided_slice %143 {offsets = [0, 64], sizes = [2, 32], strides = [1, 1]} : vector<2x128xf32> to vector<2x32xf32>
    %147 = vector.extract_strided_slice %143 {offsets = [0, 96], sizes = [2, 32], strides = [1, 1]} : vector<2x128xf32> to vector<2x32xf32>
    %148 = arith.mulf %144, %128 : vector<2x32xf32>
    %149 = arith.mulf %145, %147 : vector<2x32xf32>
    %150 = arith.addf %148, %149 : vector<2x32xf32>
    %151 = math.tanh %150 : vector<2x32xf32>
    %152 = arith.mulf %146, %151 : vector<2x32xf32>
    %153 = vector.extract_strided_slice %9 {offsets = [0, 6, 0], sizes = [2, 1, 128], strides = [1, 1, 1]} : vector<2x8x128xf32> to vector<2x1x128xf32>
    %154 = vector.shape_cast %153 : vector<2x1x128xf32> to vector<2x128xf32>
    %155 = arith.truncf %152 : vector<2x32xf32> to vector<2x32xbf16>
    %cst_26 = arith.constant dense<0.000000e+00> : vector<2x128xf32>
    %156 = tpu.matmul %155, %1, %cst_26 {dimension_numbers = #tpu.dot_dimension_numbers<[1], [0], [0], [1], [0, 0, 1, 1], [], []>} : vector<2x32xbf16>, vector<32x128xbf16>, vector<2x128xf32> -> vector<2x128xf32>
    %157 = arith.addf %154, %156 : vector<2x128xf32>
    %158 = arith.mulf %157, %15 : vector<2x128xf32>
    %159 = arith.negf %158 : vector<2x128xf32>
    %160 = math.exp %159 : vector<2x128xf32>
    %cst_27 = arith.constant 1.000000e+00 : f32
    %161 = vector.broadcast %cst_27 : f32 to vector<2x128xf32>
    %162 = arith.addf %161, %160 : vector<2x128xf32>
    %163 = arith.divf %161, %162 : vector<2x128xf32>
    %164 = arith.mulf %163, %15 : vector<2x128xf32>
    %165 = arith.addf %164, %18 : vector<2x128xf32>
    %166 = vector.extract_strided_slice %165 {offsets = [0, 0], sizes = [2, 32], strides = [1, 1]} : vector<2x128xf32> to vector<2x32xf32>
    %167 = vector.extract_strided_slice %165 {offsets = [0, 32], sizes = [2, 32], strides = [1, 1]} : vector<2x128xf32> to vector<2x32xf32>
    %168 = vector.extract_strided_slice %165 {offsets = [0, 64], sizes = [2, 32], strides = [1, 1]} : vector<2x128xf32> to vector<2x32xf32>
    %169 = vector.extract_strided_slice %165 {offsets = [0, 96], sizes = [2, 32], strides = [1, 1]} : vector<2x128xf32> to vector<2x32xf32>
    %170 = arith.mulf %166, %150 : vector<2x32xf32>
    %171 = arith.mulf %167, %169 : vector<2x32xf32>
    %172 = arith.addf %170, %171 : vector<2x32xf32>
    %173 = math.tanh %172 : vector<2x32xf32>
    %174 = arith.mulf %168, %173 : vector<2x32xf32>
    %175 = vector.extract_strided_slice %9 {offsets = [0, 7, 0], sizes = [2, 1, 128], strides = [1, 1, 1]} : vector<2x8x128xf32> to vector<2x1x128xf32>
    %176 = vector.shape_cast %175 : vector<2x1x128xf32> to vector<2x128xf32>
    %177 = arith.truncf %174 : vector<2x32xf32> to vector<2x32xbf16>
    %cst_28 = arith.constant dense<0.000000e+00> : vector<2x128xf32>
    %178 = tpu.matmul %177, %1, %cst_28 {dimension_numbers = #tpu.dot_dimension_numbers<[1], [0], [0], [1], [0, 0, 1, 1], [], []>} : vector<2x32xbf16>, vector<32x128xbf16>, vector<2x128xf32> -> vector<2x128xf32>
    %179 = arith.addf %176, %178 : vector<2x128xf32>
    %180 = arith.mulf %179, %15 : vector<2x128xf32>
    %181 = arith.negf %180 : vector<2x128xf32>
    %182 = math.exp %181 : vector<2x128xf32>
    %cst_29 = arith.constant 1.000000e+00 : f32
    %183 = vector.broadcast %cst_29 : f32 to vector<2x128xf32>
    %184 = arith.addf %183, %182 : vector<2x128xf32>
    %185 = arith.divf %183, %184 : vector<2x128xf32>
    %186 = arith.mulf %185, %15 : vector<2x128xf32>
    %187 = arith.addf %186, %18 : vector<2x128xf32>
    %188 = vector.extract_strided_slice %187 {offsets = [0, 0], sizes = [2, 32], strides = [1, 1]} : vector<2x128xf32> to vector<2x32xf32>
    %189 = vector.extract_strided_slice %187 {offsets = [0, 32], sizes = [2, 32], strides = [1, 1]} : vector<2x128xf32> to vector<2x32xf32>
    %190 = vector.extract_strided_slice %187 {offsets = [0, 64], sizes = [2, 32], strides = [1, 1]} : vector<2x128xf32> to vector<2x32xf32>
    %191 = vector.extract_strided_slice %187 {offsets = [0, 96], sizes = [2, 32], strides = [1, 1]} : vector<2x128xf32> to vector<2x32xf32>
    %192 = arith.mulf %188, %172 : vector<2x32xf32>
    %193 = arith.mulf %189, %191 : vector<2x32xf32>
    %194 = arith.addf %192, %193 : vector<2x32xf32>
    %195 = math.tanh %194 : vector<2x32xf32>
    %196 = arith.mulf %190, %195 : vector<2x32xf32>
    %c0_30 = arith.constant 0 : index
    %c0_31 = arith.constant 0 : index
    %197 = vector.load %arg4[%c0_30, %c0_31] : memref<2x32xf32, #tpu.memory_space<vmem>>, vector<2x32xf32>
    tpu.vector_store %arg4[%c0_30, %c0_31], %196 {strides = array<i32>} : memref<2x32xf32, #tpu.memory_space<vmem>>, vector<2x32xf32>,
    return
  }
}

</mosaic_0001>

<llo_original>
// kernel: tpu_custom_call.1
$region0: #{tpu_custom_call.1}
  #allocation0 [shape = 'u32[]', space=smem, size = 0x4, offset = 0x4, fixed_abs, tag = 'smem constant byte address 0x4 - core index']
  #allocation1 [shape = 'u32[144,128]{1,0:T(1,128)}', space=vmem, size = 0x12000, scoped, tag = 'internal scratch']
  %s0 = inlined_call_operand.hbm [shape: f32[2,8,16], index: 0, kind: input, shape index: {}]
  %s1 = inlined_call_operand.hbm [shape: bf16[16,128], index: 1, kind: input, shape index: {}]
  %s2 = inlined_call_operand.hbm [shape: bf16[32,128], index: 2, kind: input, shape index: {}]
  %s3 = inlined_call_operand.vmem [shape: f32[1,128], index: 3, kind: input, shape index: {}]
  %s4 = inlined_call_operand.hbm [shape: f32[2,32], index: 4, kind: output, shape index: {}]
  %s5 = sld [smem:[#allocation0]]
  $region38: #{tpu_custom_call.1} parent=0
    _
  %s7 = ssub.s32 1, %s5
  %s8 = scalar_select 0, %s7, %s5
  $region1: #{tpu_custom_call.1} parent=0
    #allocation2 [shape = 'u8[8192]{0}', space=vmem, size = 0x2000, scoped, tag = 'input window, operand 0, single buffered']
    #allocation3 [shape = 's32[1]{0}', space=sflag, size = 0x4, scoped, tag = 'scoped memory for tpu_custom_call.1']
    #allocation4 [shape = 's32[1]{0}', space=sflag, size = 0x4, scoped, tag = 'scoped memory for tpu_custom_call.1']
    #allocation5 [shape = 'u8[4096]{0}', space=vmem, size = 0x1000, scoped, tag = 'input window, operand 1, single buffered']
    #allocation6 [shape = 's32[1]{0}', space=sflag, size = 0x4, scoped, tag = 'scoped memory for tpu_custom_call.1']
    #allocation7 [shape = 'u8[8192]{0}', space=vmem, size = 0x2000, scoped, tag = 'input window, operand 2, single buffered']
    #allocation8 [shape = 'u8[1024]{0}', space=vmem, size = 0x400, scoped, tag = 'output window, operand 0, single buffered']
    %9 = vsyncpa [#allocation3], 0
    %10 = vsyncpa [#allocation6], 0
    %11 = vsyncpa [#allocation4], 0
    // Predicated region
    $region2: #{tpu_custom_call.1} parent=1 // pred_check
      _
    $region3: #{tpu_custom_call.1} parent=1 // pred_check_branch
      %13 = sbr.rel (0) target = $region5
    $region4: #{tpu_custom_call.1} parent=1 // pred_region
      %s15 = ssub.s32 256, 256
      %16 = vsyncadd [#allocation3], %s15
      %s17 = sshll.u32 [#allocation2], 4
      %s18 = int_to_ptr.vmem [resolvable:$true] %s17
      %23 = dma.hbm_to_vmem [thread:$0]  %s0, 256, %s18, [#allocation3], 128, 128, 8
    $region5: #{tpu_custom_call.1} parent=1 // pred_fallthru
      _
    // Predicated region
    $region6: #{tpu_custom_call.1} parent=1 // pred_check
      _
    $region7: #{tpu_custom_call.1} parent=1 // pred_check_branch
      %25 = sbr.rel (0) target = $region9
    $region8: #{tpu_custom_call.1} parent=1 // pred_region
      %s27 = ssub.s32 128, 128
      %28 = vsyncadd [#allocation6], %s27
      %s29 = sshll.u32 [#allocation5], 4
      %s30 = int_to_ptr.vmem [resolvable:$true] %s29
      %35 = dma.hbm_to_vmem [thread:$0]  %s1, 128, %s30, [#allocation6], 64, 64, 4
    $region9: #{tpu_custom_call.1} parent=1 // pred_fallthru
      _
    // Predicated region
    $region10: #{tpu_custom_call.1} parent=1 // pred_check
      _
    $region11: #{tpu_custom_call.1} parent=1 // pred_check_branch
      %37 = sbr.rel (0) target = $region13
    $region12: #{tpu_custom_call.1} parent=1 // pred_region
      %s39 = ssub.s32 256, 256
      %40 = vsyncadd [#allocation6], %s39
      %s41 = sshll.u32 [#allocation7], 4
      %s42 = int_to_ptr.vmem [resolvable:$true] %s41
      %47 = dma.hbm_to_vmem [thread:$0]  %s2, 256, %s42, [#allocation6], 64, 64, 4
    $region13: #{tpu_custom_call.1} parent=1 // pred_fallthru
      _
    // Predicated region
    $region14: #{tpu_custom_call.1} parent=1 // pred_check
      _
    $region15: #{tpu_custom_call.1} parent=1 // pred_check_branch
      %49 = sbr.rel (0) target = $region17
    $region16: #{tpu_custom_call.1} parent=1 // pred_region
      _
    $region17: #{tpu_custom_call.1} parent=1 // pred_fallthru
      _
    // Predicated region
    $region18: #{tpu_custom_call.1} parent=1 // pred_check
      _
    $region19: #{tpu_custom_call.1} parent=1 // pred_check_branch
      %51 = sbr.rel (0) target = $region21
    $region20: #{tpu_custom_call.1} parent=1 // pred_region
      %52 = dma.done [#allocation3], 256
    $region21: #{tpu_custom_call.1} parent=1 // pred_fallthru
      _
    // Predicated region
    $region22: #{tpu_custom_call.1} parent=1 // pred_check
      _
    $region23: #{tpu_custom_call.1} parent=1 // pred_check_branch
      %54 = sbr.rel (0) target = $region25
    $region24: #{tpu_custom_call.1} parent=1 // pred_region
      %55 = dma.done [#allocation6], 128
    $region25: #{tpu_custom_call.1} parent=1 // pred_fallthru
      _
    // Predicated region
    $region26: #{tpu_custom_call.1} parent=1 // pred_check
      _
    $region27: #{tpu_custom_call.1} parent=1 // pred_check_branch
      %57 = sbr.rel (0) target = $region29
    $region28: #{tpu_custom_call.1} parent=1 // pred_region
      %58 = dma.done [#allocation6], 256
    $region29: #{tpu_custom_call.1} parent=1 // pred_fallthru
      _
    %v60 = vld [vmem:[#allocation5] sm:$0xf]
    %v61 = vld [vmem:[#allocation5 + $0x4] sm:$0xf]
    %v62 = vld [vmem:[#allocation7] sm:$0xf]
    %v63 = vld [vmem:[#allocation7 + $0x4] sm:$0xf]
    %v64 = vld [vmem:[#allocation7 + $0x8] sm:$0xf]
    %v65 = vld [vmem:[#allocation7 + $0xc] sm:$0xf]
    %v66 = vld [vmem:[%s3] sm:$0x1]
    %v67 = vld [vmem:[#allocation2] sm:$0xff]
    %v68 = vld [vmem:[#allocation2 + $0x8] sm:$0xff]
    %v69 = vpack.c.bf16 %v68, %v67
    %v71 = vlaneseq
    %v72 = vshrl.u32 %v71, 7
    %v73 = vsub.s32 0, %v72
    %v74 = vrot.slane %v66, %v73
    %v78 = vunpack.c.l.b16 %v60
    %v79 = vunpack.c.l.b16 %v61
    %v80 = vpack.c.b16 %v79, %v78
    %vm82 = vcmask 130048
    %v84 = vsel %vm82, %v69, 0
    %86 = vmatprep.subr.bf16.mxu0 0
    %87 = vmatpush1.bf16.msra.mxu0 %v80
    %88 = vmatprep.subr.bf16.mxu0 0
    %89 = vmatpush1.bf16.msra.mxu0 0
    %90 = vmatprep.subr.bf16.mxu0 0
    %91 = vmatpush1.bf16.msra.mxu0 0
    %92 = vmatprep.subr.bf16.mxu0 0
    %93 = vmatpush1.bf16.msra.mxu0 0
    %94 = vmatprep.subr.bf16.mxu0 0
    %95 = vmatpush1.bf16.msra.mxu0 0
    %96 = vmatprep.subr.bf16.mxu0 0
    %97 = vmatpush1.bf16.msra.mxu0 0
    %98 = vmatprep.subr.bf16.mxu0 0
    %99 = vmatpush1.bf16.msra.mxu0 0
    %100 = vmatprep.subr.bf16.mxu0 0
    %101 = vmatpush1.bf16.msra.mxu0 0
    %102 = vmatprep.subr.bf16.mxu0 0
    %103 = vmatpush1.bf16.msra.mxu0 0
    %104 = vmatprep.subr.bf16.mxu0 0
    %105 = vmatpush1.bf16.msra.mxu0 0
    %106 = vmatprep.subr.bf16.mxu0 0
    %107 = vmatpush1.bf16.msra.mxu0 0
    %108 = vmatprep.subr.bf16.mxu0 0
    %109 = vmatpush1.bf16.msra.mxu0 0
    %110 = vmatprep.subr.bf16.mxu0 0
    %111 = vmatpush1.bf16.msra.mxu0 0
    %112 = vmatprep.subr.bf16.mxu0 0
    %113 = vmatpush1.bf16.msra.mxu0 0
    %114 = vmatprep.subr.bf16.mxu0 0
    %115 = vmatpush1.bf16.msra.mxu0 0
    %116 = vmatprep.subr.bf16.mxu0 0
    %117 = vmatpush1.bf16.msra.mxu0 0
    %118 = vmatprep.mubr.bf16.mxu0 0
    %119 = vmatmul.mubr.bf16.gmra.mrb[0].mxu0 %v84
    %v120 = vpop.f32.mrb[0].mxu0
    %v121 = vadd.f32 %v74, %v120
    %v122 = vpop.f32.mrb[0].mxu0
    %v123 = vpop.f32.mrb[0].mxu0
    %v124 = vadd.f32 %v74, %v123
    %v125 = vpop.f32.mrb[0].mxu0
    %126 = vdwg.mxu0
    %v127 = vlaneseq
    %v128 = vand.u32 %v127, 127
    %vm129 = vcmp.ge.s32.totalorder %v128, 96
    %v130 = vsel %vm129, 2.0, 1.0
    %v131 = vsel %vm129, -1.0, 0.0
    %v136 = vunpack.c.l.b16 %v62
    %v137 = vunpack.c.l.b16 %v63
    %v138 = vunpack.c.l.b16 %v64
    %v139 = vunpack.c.l.b16 %v65
    %v140 = vpack.c.b16 %v137, %v136
    %v141 = vpack.c.b16 %v139, %v138
    %vm144 = vcmask 261120
    %v146 = vsel %vm144, 0, 0
    %148 = vmatprep.subr.bf16.mxu0 0
    %149 = vmatpush1.bf16.msra.mxu0 %v140
    %150 = vmatprep.subr.bf16.mxu0 0
    %151 = vmatpush1.bf16.msra.mxu0 %v141
    %152 = vmatprep.subr.bf16.mxu0 0
    %153 = vmatpush1.bf16.msra.mxu0 0
    %154 = vmatprep.subr.bf16.mxu0 0
    %155 = vmatpush1.bf16.msra.mxu0 0
    %156 = vmatprep.subr.bf16.mxu0 0
    %157 = vmatpush1.bf16.msra.mxu0 0
    %158 = vmatprep.subr.bf16.mxu0 0
    %159 = vmatpush1.bf16.msra.mxu0 0
    %160 = vmatprep.subr.bf16.mxu0 0
    %161 = vmatpush1.bf16.msra.mxu0 0
    %162 = vmatprep.subr.bf16.mxu0 0
    %163 = vmatpush1.bf16.msra.mxu0 0
    %164 = vmatprep.subr.bf16.mxu0 0
    %165 = vmatpush1.bf16.msra.mxu0 0
    %166 = vmatprep.subr.bf16.mxu0 0
    %167 = vmatpush1.bf16.msra.mxu0 0
    %168 = vmatprep.subr.bf16.mxu0 0
    %169 = vmatpush1.bf16.msra.mxu0 0
    %170 = vmatprep.subr.bf16.mxu0 0
    %171 = vmatpush1.bf16.msra.mxu0 0
    %172 = vmatprep.subr.bf16.mxu0 0
    %173 = vmatpush1.bf16.msra.mxu0 0
    %174 = vmatprep.subr.bf16.mxu0 0
    %175 = vmatpush1.bf16.msra.mxu0 0
    %176 = vmatprep.subr.bf16.mxu0 0
    %177 = vmatpush1.bf16.msra.mxu0 0
    %178 = vmatprep.subr.bf16.mxu0 0
    %179 = vmatpush1.bf16.msra.mxu0 0
    %180 = vmatprep.mubr.bf16.mxu0 0
    %181 = vmatmul.mubr.bf16.gmra.mrb[0].mxu0 %v146
    %v182 = vpop.f32.mrb[0].mxu0
    %v183 = vadd.f32 0.0, %v182
    %v184 = vpop.f32.mrb[0].mxu0
    %v185 = vpop.f32.mrb[0].mxu0
    %v186 = vpop.f32.mrb[0].mxu0
    %187 = vdwg.mxu0
    %v189 = vrot.slane %v183, 1
    %v192 = vadd.f32 %v121, %v183
    %v193 = vadd.f32 %v124, %v189
    %v194 = vmul.f32 %v192, %v130
    %v195 = vmul.f32 %v193, %v130
    %v196 = vxor.u32 %v194, 2147483648
    %v197 = vxor.u32 %v195, 2147483648
    %v198 = vmul.f32 %v196, 1.442695
    %v199 = vpow.pop %v198
    %v200 = vmul.f32 %v197, 1.442695
    %v201 = vpow.pop %v200
    %v202 = vadd.f32 %v199, 1.0
    %v203 = vadd.f32 %v201, 1.0
    %v204 = vrcp.pop %v202
    %v205 = vmul.f32 1.0, %v204
    %v206 = vrcp.pop %v203
    %v207 = vmul.f32 1.0, %v206
    %v208 = vmul.f32 %v205, %v130
    %v209 = vmul.f32 %v207, %v130
    %v210 = vadd.f32 %v208, %v131
    %v211 = vadd.f32 %v209, %v131
    %v212 = vmul.f32 %v210, 0.0
    %v213 = vmul.f32 %v211, 0.0
    %216 = vrot.lane.b32.xlu0 %v210, 64
    %v217 = vpop.permute.xlu0 %216
    %218 = vrot.lane.b32.xlu0 %v211, 64
    %v219 = vpop.permute.xlu0 %218
    %v222 = vmul.f32 %v210, %v217
    %v223 = vmul.f32 %v211, %v219
    %226 = vrot.lane.b32.xlu0 %v222, 96
    %v227 = vpop.permute.xlu0 %226
    %228 = vrot.lane.b32.xlu0 %v223, 96
    %v229 = vpop.permute.xlu0 %228
    %v232 = vadd.f32 %v212, %v227
    %v233 = vadd.f32 %v213, %v229
    %v234 = vtanh.pop %v232
    %v235 = vtanh.pop %v233
    %238 = vrot.lane.b32.xlu0 %v234, 64
    %v239 = vpop.permute.xlu0 %238
    %240 = vrot.lane.b32.xlu0 %v235, 64
    %v241 = vpop.permute.xlu0 %240
    %v244 = vmul.f32 %v210, %v239
    %v245 = vmul.f32 %v211, %v241
    %v246 = vpack.c.bf16 %v244, %v244
    %v247 = vpack.c.bf16 %v245, %v245
    %v250 = vunpack.c.l.b16 %v246
    %v251 = vunpack.c.l.b16 %v247
    %v252 = vrot.slane %v251, 7
    %vm253 = vcmask 1041409
    %v254 = vsel %vm253, %v252, %v250
    %v255 = vpack.c.b16 %v254, %v254
    %256 = vrot.lane.b32.xlu0 %v255, 64
    %v257 = vpop.permute.xlu0 %256
    %v259 = vsel %vm144, %v257, 0
    %261 = vmatprep.subr.bf16.mxu0 0
    %262 = vmatpush1.bf16.msra.mxu0 %v140
    %263 = vmatprep.subr.bf16.mxu0 0
    %264 = vmatpush1.bf16.msra.mxu0 %v141
    %265 = vmatprep.subr.bf16.mxu0 0
    %266 = vmatpush1.bf16.msra.mxu0 0
    %267 = vmatprep.subr.bf16.mxu0 0
    %268 = vmatpush1.bf16.msra.mxu0 0
    %269 = vmatprep.subr.bf16.mxu0 0
    %270 = vmatpush1.bf16.msra.mxu0 0
    %271 = vmatprep.subr.bf16.mxu0 0
    %272 = vmatpush1.bf16.msra.mxu0 0
    %273 = vmatprep.subr.bf16.mxu0 0
    %274 = vmatpush1.bf16.msra.mxu0 0
    %275 = vmatprep.subr.bf16.mxu0 0
    %276 = vmatpush1.bf16.msra.mxu0 0
    %277 = vmatprep.subr.bf16.mxu0 0
    %278 = vmatpush1.bf16.msra.mxu0 0
    %279 = vmatprep.subr.bf16.mxu0 0
    %280 = vmatpush1.bf16.msra.mxu0 0
    %281 = vmatprep.subr.bf16.mxu0 0
    %282 = vmatpush1.bf16.msra.mxu0 0
    %283 = vmatprep.subr.bf16.mxu0 0
    %284 = vmatpush1.bf16.msra.mxu0 0
    %285 = vmatprep.subr.bf16.mxu0 0
    %286 = vmatpush1.bf16.msra.mxu0 0
    %287 = vmatprep.subr.bf16.mxu0 0
    %288 = vmatpush1.bf16.msra.mxu0 0
    %289 = vmatprep.subr.bf16.mxu0 0
    %290 = vmatpush1.bf16.msra.mxu0 0
    %291 = vmatprep.subr.bf16.mxu0 0
    %292 = vmatpush1.bf16.msra.mxu0 0
    %293 = vmatprep.mubr.bf16.mxu0 0
    %294 = vmatmul.mubr.bf16.gmra.mrb[0].mxu0 %v259
    %v295 = vpop.f32.mrb[0].mxu0
    %v296 = vadd.f32 0.0, %v295
    %v297 = vpop.f32.mrb[0].mxu0
    %v298 = vpop.f32.mrb[0].mxu0
    %v299 = vpop.f32.mrb[0].mxu0
    %300 = vdwg.mxu0
    %v302 = vrot.slane %v296, 7
    %v305 = vadd.f32 %v121, %v302
    %v306 = vadd.f32 %v124, %v296
    %v307 = vmul.f32 %v305, %v130
    %v308 = vmul.f32 %v306, %v130
    %v309 = vxor.u32 %v307, 2147483648
    %v310 = vxor.u32 %v308, 2147483648
    %v311 = vmul.f32 %v309, 1.442695
    %v312 = vpow.pop %v311
    %v313 = vmul.f32 %v310, 1.442695
    %v314 = vpow.pop %v313
    %v315 = vadd.f32 %v312, 1.0
    %v316 = vadd.f32 %v314, 1.0
    %v317 = vrcp.pop %v315
    %v318 = vmul.f32 1.0, %v317
    %v319 = vrcp.pop %v316
    %v320 = vmul.f32 1.0, %v319
    %v321 = vmul.f32 %v318, %v130
    %v322 = vmul.f32 %v320, %v130
    %v323 = vadd.f32 %v321, %v131
    %v324 = vadd.f32 %v322, %v131
    %v327 = vrot.slane %v232, 7
    %v328 = vrot.slane %v233, 7
    %v331 = vmul.f32 %v323, %v327
    %v332 = vmul.f32 %v324, %v328
    %335 = vrot.lane.b32.xlu0 %v323, 64
    %v336 = vpop.permute.xlu0 %335
    %337 = vrot.lane.b32.xlu0 %v324, 64
    %v338 = vpop.permute.xlu0 %337
    %v341 = vmul.f32 %v323, %v336
    %v342 = vmul.f32 %v324, %v338
    %345 = vrot.lane.b32.xlu0 %v341, 96
    %v346 = vpop.permute.xlu0 %345
    %347 = vrot.lane.b32.xlu0 %v342, 96
    %v348 = vpop.permute.xlu0 %347
    %v351 = vadd.f32 %v331, %v346
    %v352 = vadd.f32 %v332, %v348
    %v353 = vtanh.pop %v351
    %v354 = vtanh.pop %v352
    %357 = vrot.lane.b32.xlu0 %v353, 64
    %v358 = vpop.permute.xlu0 %357
    %359 = vrot.lane.b32.xlu0 %v354, 64
    %v360 = vpop.permute.xlu0 %359
    %v363 = vmul.f32 %v323, %v358
    %v364 = vmul.f32 %v324, %v360
    %v365 = vpack.c.bf16 %v363, %v363
    %v366 = vpack.c.bf16 %v364, %v364
    %v369 = vunpack.c.l.b16 %v365
    %v370 = vunpack.c.l.b16 %v366
    %v371 = vrot.slane %v369, 1
    %v372 = vsel %vm253, %v370, %v371
    %v373 = vpack.c.b16 %v372, %v372
    %374 = vrot.lane.b32.xlu0 %v373, 64
    %v375 = vpop.permute.xlu0 %374
    %v377 = vsel %vm144, %v375, 0
    %379 = vmatprep.subr.bf16.mxu0 0
    %380 = vmatpush1.bf16.msra.mxu0 %v140
    %381 = vmatprep.subr.bf16.mxu0 0
    %382 = vmatpush1.bf16.msra.mxu0 %v141
    %383 = vmatprep.subr.bf16.mxu0 0
    %384 = vmatpush1.bf16.msra.mxu0 0
    %385 = vmatprep.subr.bf16.mxu0 0
    %386 = vmatpush1.bf16.msra.mxu0 0
    %387 = vmatprep.subr.bf16.mxu0 0
    %388 = vmatpush1.bf16.msra.mxu0 0
    %389 = vmatprep.subr.bf16.mxu0 0
    %390 = vmatpush1.bf16.msra.mxu0 0
    %391 = vmatprep.subr.bf16.mxu0 0
    %392 = vmatpush1.bf16.msra.mxu0 0
    %393 = vmatprep.subr.bf16.mxu0 0
    %394 = vmatpush1.bf16.msra.mxu0 0
    %395 = vmatprep.subr.bf16.mxu0 0
    %396 = vmatpush1.bf16.msra.mxu0 0
    %397 = vmatprep.subr.bf16.mxu0 0
    %398 = vmatpush1.bf16.msra.mxu0 0
    %399 = vmatprep.subr.bf16.mxu0 0
    %400 = vmatpush1.bf16.msra.mxu0 0
    %401 = vmatprep.subr.bf16.mxu0 0
    %402 = vmatpush1.bf16.msra.mxu0 0
    %403 = vmatprep.subr.bf16.mxu0 0
    %404 = vmatpush1.bf16.msra.mxu0 0
    %405 = vmatprep.subr.bf16.mxu0 0
    %406 = vmatpush1.bf16.msra.mxu0 0
    %407 = vmatprep.subr.bf16.mxu0 0
    %408 = vmatpush1.bf16.msra.mxu0 0
    %409 = vmatprep.subr.bf16.mxu0 0
    %410 = vmatpush1.bf16.msra.mxu0 0
    %411 = vmatprep.mubr.bf16.mxu0 0
    %412 = vmatmul.mubr.bf16.gmra.mrb[0].mxu0 %v377
    %v413 = vpop.f32.mrb[0].mxu0
    %v414 = vadd.f32 0.0, %v413
    %v415 = vpop.f32.mrb[0].mxu0
    %v416 = vpop.f32.mrb[0].mxu0
    %v417 = vpop.f32.mrb[0].mxu0
    %418 = vdwg.mxu0
    %v420 = vrot.slane %v414, 6
    %v421 = vrot.slane %v414, 7
    %v424 = vadd.f32 %v121, %v420
    %v425 = vadd.f32 %v124, %v421
    %v426 = vmul.f32 %v424, %v130
    %v427 = vmul.f32 %v425, %v130
    %v428 = vxor.u32 %v426, 2147483648
    %v429 = vxor.u32 %v427, 2147483648
    %v430 = vmul.f32 %v428, 1.442695
    %v431 = vpow.pop %v430
    %v432 = vmul.f32 %v429, 1.442695
    %v433 = vpow.pop %v432
    %v434 = vadd.f32 %v431, 1.0
    %v435 = vadd.f32 %v433, 1.0
    %v436 = vrcp.pop %v434
    %v437 = vmul.f32 1.0, %v436
    %v438 = vrcp.pop %v435
    %v439 = vmul.f32 1.0, %v438
    %v440 = vmul.f32 %v437, %v130
    %v441 = vmul.f32 %v439, %v130
    %v442 = vadd.f32 %v440, %v131
    %v443 = vadd.f32 %v441, %v131
    %v446 = vrot.slane %v351, 7
    %v447 = vrot.slane %v352, 7
    %v450 = vmul.f32 %v442, %v446
    %v451 = vmul.f32 %v443, %v447
    %454 = vrot.lane.b32.xlu0 %v442, 64
    %v455 = vpop.permute.xlu0 %454
    %456 = vrot.lane.b32.xlu0 %v443, 64
    %v457 = vpop.permute.xlu0 %456
    %v460 = vmul.f32 %v442, %v455
    %v461 = vmul.f32 %v443, %v457
    %464 = vrot.lane.b32.xlu0 %v460, 96
    %v465 = vpop.permute.xlu0 %464
    %466 = vrot.lane.b32.xlu0 %v461, 96
    %v467 = vpop.permute.xlu0 %466
    %v470 = vadd.f32 %v450, %v465
    %v471 = vadd.f32 %v451, %v467
    %v472 = vtanh.pop %v470
    %v473 = vtanh.pop %v471
    %476 = vrot.lane.b32.xlu0 %v472, 64
    %v477 = vpop.permute.xlu0 %476
    %478 = vrot.lane.b32.xlu0 %v473, 64
    %v479 = vpop.permute.xlu0 %478
    %v482 = vmul.f32 %v442, %v477
    %v483 = vmul.f32 %v443, %v479
    %v484 = vpack.c.bf16 %v482, %v482
    %v485 = vpack.c.bf16 %v483, %v483
    %v488 = vunpack.c.l.b16 %v484
    %v489 = vunpack.c.l.b16 %v485
    %v490 = vrot.slane %v488, 2
    %v491 = vrot.slane %v489, 1
    %v492 = vsel %vm253, %v491, %v490
    %v493 = vpack.c.b16 %v492, %v492
    %494 = vrot.lane.b32.xlu0 %v493, 64
    %v495 = vpop.permute.xlu0 %494
    %v497 = vsel %vm144, %v495, 0
    %499 = vmatprep.subr.bf16.mxu0 0
    %500 = vmatpush1.bf16.msra.mxu0 %v140
    %501 = vmatprep.subr.bf16.mxu0 0
    %502 = vmatpush1.bf16.msra.mxu0 %v141
    %503 = vmatprep.subr.bf16.mxu0 0
    %504 = vmatpush1.bf16.msra.mxu0 0
    %505 = vmatprep.subr.bf16.mxu0 0
    %506 = vmatpush1.bf16.msra.mxu0 0
    %507 = vmatprep.subr.bf16.mxu0 0
    %508 = vmatpush1.bf16.msra.mxu0 0
    %509 = vmatprep.subr.bf16.mxu0 0
    %510 = vmatpush1.bf16.msra.mxu0 0
    %511 = vmatprep.subr.bf16.mxu0 0
    %512 = vmatpush1.bf16.msra.mxu0 0
    %513 = vmatprep.subr.bf16.mxu0 0
    %514 = vmatpush1.bf16.msra.mxu0 0
    %515 = vmatprep.subr.bf16.mxu0 0
    %516 = vmatpush1.bf16.msra.mxu0 0
    %517 = vmatprep.subr.bf16.mxu0 0
    %518 = vmatpush1.bf16.msra.mxu0 0
    %519 = vmatprep.subr.bf16.mxu0 0
    %520 = vmatpush1.bf16.msra.mxu0 0
    %521 = vmatprep.subr.bf16.mxu0 0
    %522 = vmatpush1.bf16.msra.mxu0 0
    %523 = vmatprep.subr.bf16.mxu0 0
    %524 = vmatpush1.bf16.msra.mxu0 0
    %525 = vmatprep.subr.bf16.mxu0 0
    %526 = vmatpush1.bf16.msra.mxu0 0
    %527 = vmatprep.subr.bf16.mxu0 0
    %528 = vmatpush1.bf16.msra.mxu0 0
    %529 = vmatprep.subr.bf16.mxu0 0
    %530 = vmatpush1.bf16.msra.mxu0 0
    %531 = vmatprep.mubr.bf16.mxu0 0
    %532 = vmatmul.mubr.bf16.gmra.mrb[0].mxu0 %v497
    %v533 = vpop.f32.mrb[0].mxu0
    %v534 = vadd.f32 0.0, %v533
    %v535 = vpop.f32.mrb[0].mxu0
    %v536 = vpop.f32.mrb[0].mxu0
    %v537 = vpop.f32.mrb[0].mxu0
    %538 = vdwg.mxu0
    %v540 = vrot.slane %v534, 5
    %v541 = vrot.slane %v534, 6
    %v544 = vadd.f32 %v121, %v540
    %v545 = vadd.f32 %v124, %v541
    %v546 = vmul.f32 %v544, %v130
    %v547 = vmul.f32 %v545, %v130
    %v548 = vxor.u32 %v546, 2147483648
    %v549 = vxor.u32 %v547, 2147483648
    %v550 = vmul.f32 %v548, 1.442695
    %v551 = vpow.pop %v550
    %v552 = vmul.f32 %v549, 1.442695
    %v553 = vpow.pop %v552
    %v554 = vadd.f32 %v551, 1.0
    %v555 = vadd.f32 %v553, 1.0
    %v556 = vrcp.pop %v554
    %v557 = vmul.f32 1.0, %v556
    %v558 = vrcp.pop %v555
    %v559 = vmul.f32 1.0, %v558
    %v560 = vmul.f32 %v557, %v130
    %v561 = vmul.f32 %v559, %v130
    %v562 = vadd.f32 %v560, %v131
    %v563 = vadd.f32 %v561, %v131
    %v566 = vrot.slane %v470, 7
    %v567 = vrot.slane %v471, 7
    %v570 = vmul.f32 %v562, %v566
    %v571 = vmul.f32 %v563, %v567
    %574 = vrot.lane.b32.xlu0 %v562, 64
    %v575 = vpop.permute.xlu0 %574
    %576 = vrot.lane.b32.xlu0 %v563, 64
    %v577 = vpop.permute.xlu0 %576
    %v580 = vmul.f32 %v562, %v575
    %v581 = vmul.f32 %v563, %v577
    %584 = vrot.lane.b32.xlu0 %v580, 96
    %v585 = vpop.permute.xlu0 %584
    %586 = vrot.lane.b32.xlu0 %v581, 96
    %v587 = vpop.permute.xlu0 %586
    %v590 = vadd.f32 %v570, %v585
    %v591 = vadd.f32 %v571, %v587
    %v592 = vtanh.pop %v590
    %v593 = vtanh.pop %v591
    %596 = vrot.lane.b32.xlu0 %v592, 64
    %v597 = vpop.permute.xlu0 %596
    %598 = vrot.lane.b32.xlu0 %v593, 64
    %v599 = vpop.permute.xlu0 %598
    %v602 = vmul.f32 %v562, %v597
    %v603 = vmul.f32 %v563, %v599
    %v604 = vpack.c.bf16 %v602, %v602
    %v605 = vpack.c.bf16 %v603, %v603
    %v608 = vunpack.c.l.b16 %v604
    %v609 = vunpack.c.l.b16 %v605
    %v610 = vrot.slane %v608, 3
    %v611 = vrot.slane %v609, 2
    %v612 = vsel %vm253, %v611, %v610
    %v613 = vpack.c.b16 %v612, %v612
    %614 = vrot.lane.b32.xlu0 %v613, 64
    %v615 = vpop.permute.xlu0 %614
    %v617 = vsel %vm144, %v615, 0
    %619 = vmatprep.subr.bf16.mxu0 0
    %620 = vmatpush1.bf16.msra.mxu0 %v140
    %621 = vmatprep.subr.bf16.mxu0 0
    %622 = vmatpush1.bf16.msra.mxu0 %v141
    %623 = vmatprep.subr.bf16.mxu0 0
    %624 = vmatpush1.bf16.msra.mxu0 0
    %625 = vmatprep.subr.bf16.mxu0 0
    %626 = vmatpush1.bf16.msra.mxu0 0
    %627 = vmatprep.subr.bf16.mxu0 0
    %628 = vmatpush1.bf16.msra.mxu0 0
    %629 = vmatprep.subr.bf16.mxu0 0
    %630 = vmatpush1.bf16.msra.mxu0 0
    %631 = vmatprep.subr.bf16.mxu0 0
    %632 = vmatpush1.bf16.msra.mxu0 0
    %633 = vmatprep.subr.bf16.mxu0 0
    %634 = vmatpush1.bf16.msra.mxu0 0
    %635 = vmatprep.subr.bf16.mxu0 0
    %636 = vmatpush1.bf16.msra.mxu0 0
    %637 = vmatprep.subr.bf16.mxu0 0
    %638 = vmatpush1.bf16.msra.mxu0 0
    %639 = vmatprep.subr.bf16.mxu0 0
    %640 = vmatpush1.bf16.msra.mxu0 0
    %641 = vmatprep.subr.bf16.mxu0 0
    %642 = vmatpush1.bf16.msra.mxu0 0
    %643 = vmatprep.subr.bf16.mxu0 0
    %644 = vmatpush1.bf16.msra.mxu0 0
    %645 = vmatprep.subr.bf16.mxu0 0
    %646 = vmatpush1.bf16.msra.mxu0 0
    %647 = vmatprep.subr.bf16.mxu0 0
    %648 = vmatpush1.bf16.msra.mxu0 0
    %649 = vmatprep.subr.bf16.mxu0 0
    %650 = vmatpush1.bf16.msra.mxu0 0
    %651 = vmatprep.mubr.bf16.mxu0 0
    %652 = vmatmul.mubr.bf16.gmra.mrb[0].mxu0 %v617
    %v653 = vpop.f32.mrb[0].mxu0
    %v654 = vadd.f32 0.0, %v653
    %v655 = vpop.f32.mrb[0].mxu0
    %v656 = vpop.f32.mrb[0].mxu0
    %v657 = vpop.f32.mrb[0].mxu0
    %658 = vdwg.mxu0
    %v660 = vrot.slane %v654, 4
    %v661 = vrot.slane %v654, 5
    %v664 = vadd.f32 %v121, %v660
    %v665 = vadd.f32 %v124, %v661
    %v666 = vmul.f32 %v664, %v130
    %v667 = vmul.f32 %v665, %v130
    %v668 = vxor.u32 %v666, 2147483648
    %v669 = vxor.u32 %v667, 2147483648
    %v670 = vmul.f32 %v668, 1.442695
    %v671 = vpow.pop %v670
    %v672 = vmul.f32 %v669, 1.442695
    %v673 = vpow.pop %v672
    %v674 = vadd.f32 %v671, 1.0
    %v675 = vadd.f32 %v673, 1.0
    %v676 = vrcp.pop %v674
    %v677 = vmul.f32 1.0, %v676
    %v678 = vrcp.pop %v675
    %v679 = vmul.f32 1.0, %v678
    %v680 = vmul.f32 %v677, %v130
    %v681 = vmul.f32 %v679, %v130
    %v682 = vadd.f32 %v680, %v131
    %v683 = vadd.f32 %v681, %v131
    %v686 = vrot.slane %v590, 7
    %v687 = vrot.slane %v591, 7
    %v690 = vmul.f32 %v682, %v686
    %v691 = vmul.f32 %v683, %v687
    %694 = vrot.lane.b32.xlu0 %v682, 64
    %v695 = vpop.permute.xlu0 %694
    %696 = vrot.lane.b32.xlu0 %v683, 64
    %v697 = vpop.permute.xlu0 %696
    %v700 = vmul.f32 %v682, %v695
    %v701 = vmul.f32 %v683, %v697
    %704 = vrot.lane.b32.xlu0 %v700, 96
    %v705 = vpop.permute.xlu0 %704
    %706 = vrot.lane.b32.xlu0 %v701, 96
    %v707 = vpop.permute.xlu0 %706
    %v710 = vadd.f32 %v690, %v705
    %v711 = vadd.f32 %v691, %v707
    %v712 = vtanh.pop %v710
    %v713 = vtanh.pop %v711
    %716 = vrot.lane.b32.xlu0 %v712, 64
    %v717 = vpop.permute.xlu0 %716
    %718 = vrot.lane.b32.xlu0 %v713, 64
    %v719 = vpop.permute.xlu0 %718
    %v722 = vmul.f32 %v682, %v717
    %v723 = vmul.f32 %v683, %v719
    %v724 = vpack.c.bf16 %v722, %v722
    %v725 = vpack.c.bf16 %v723, %v723
    %v728 = vunpack.c.l.b16 %v724
    %v729 = vunpack.c.l.b16 %v725
    %v730 = vrot.slane %v728, 4
    %v731 = vrot.slane %v729, 3
    %v732 = vsel %vm253, %v731, %v730
    %v733 = vpack.c.b16 %v732, %v732
    %734 = vrot.lane.b32.xlu0 %v733, 64
    %v735 = vpop.permute.xlu0 %734
    %v737 = vsel %vm144, %v735, 0
    %739 = vmatprep.subr.bf16.mxu0 0
    %740 = vmatpush1.bf16.msra.mxu0 %v140
    %741 = vmatprep.subr.bf16.mxu0 0
    %742 = vmatpush1.bf16.msra.mxu0 %v141
    %743 = vmatprep.subr.bf16.mxu0 0
    %744 = vmatpush1.bf16.msra.mxu0 0
    %745 = vmatprep.subr.bf16.mxu0 0
    %746 = vmatpush1.bf16.msra.mxu0 0
    %747 = vmatprep.subr.bf16.mxu0 0
    %748 = vmatpush1.bf16.msra.mxu0 0
    %749 = vmatprep.subr.bf16.mxu0 0
    %750 = vmatpush1.bf16.msra.mxu0 0
    %751 = vmatprep.subr.bf16.mxu0 0
    %752 = vmatpush1.bf16.msra.mxu0 0
    %753 = vmatprep.subr.bf16.mxu0 0
    %754 = vmatpush1.bf16.msra.mxu0 0
    %755 = vmatprep.subr.bf16.mxu0 0
    %756 = vmatpush1.bf16.msra.mxu0 0
    %757 = vmatprep.subr.bf16.mxu0 0
    %758 = vmatpush1.bf16.msra.mxu0 0
    %759 = vmatprep.subr.bf16.mxu0 0
    %760 = vmatpush1.bf16.msra.mxu0 0
    %761 = vmatprep.subr.bf16.mxu0 0
    %762 = vmatpush1.bf16.msra.mxu0 0
    %763 = vmatprep.subr.bf16.mxu0 0
    %764 = vmatpush1.bf16.msra.mxu0 0
    %765 = vmatprep.subr.bf16.mxu0 0
    %766 = vmatpush1.bf16.msra.mxu0 0
    %767 = vmatprep.subr.bf16.mxu0 0
    %768 = vmatpush1.bf16.msra.mxu0 0
    %769 = vmatprep.subr.bf16.mxu0 0
    %770 = vmatpush1.bf16.msra.mxu0 0
    %771 = vmatprep.mubr.bf16.mxu0 0
    %772 = vmatmul.mubr.bf16.gmra.mrb[0].mxu0 %v737
    %v773 = vpop.f32.mrb[0].mxu0
    %v774 = vadd.f32 0.0, %v773
    %v775 = vpop.f32.mrb[0].mxu0
    %v776 = vpop.f32.mrb[0].mxu0
    %v777 = vpop.f32.mrb[0].mxu0
    %778 = vdwg.mxu0
    %v780 = vrot.slane %v774, 3
    %v781 = vrot.slane %v774, 4
    %v784 = vadd.f32 %v121, %v780
    %v785 = vadd.f32 %v124, %v781
    %v786 = vmul.f32 %v784, %v130
    %v787 = vmul.f32 %v785, %v130
    %v788 = vxor.u32 %v786, 2147483648
    %v789 = vxor.u32 %v787, 2147483648
    %v790 = vmul.f32 %v788, 1.442695
    %v791 = vpow.pop %v790
    %v792 = vmul.f32 %v789, 1.442695
    %v793 = vpow.pop %v792
    %v794 = vadd.f32 %v791, 1.0
    %v795 = vadd.f32 %v793, 1.0
    %v796 = vrcp.pop %v794
    %v797 = vmul.f32 1.0, %v796
    %v798 = vrcp.pop %v795
    %v799 = vmul.f32 1.0, %v798
    %v800 = vmul.f32 %v797, %v130
    %v801 = vmul.f32 %v799, %v130
    %v802 = vadd.f32 %v800, %v131
    %v803 = vadd.f32 %v801, %v131
    %v806 = vrot.slane %v710, 7
    %v807 = vrot.slane %v711, 7
    %v810 = vmul.f32 %v802, %v806
    %v811 = vmul.f32 %v803, %v807
    %814 = vrot.lane.b32.xlu0 %v802, 64
    %v815 = vpop.permute.xlu0 %814
    %816 = vrot.lane.b32.xlu0 %v803, 64
    %v817 = vpop.permute.xlu0 %816
    %v820 = vmul.f32 %v802, %v815
    %v821 = vmul.f32 %v803, %v817
    %824 = vrot.lane.b32.xlu0 %v820, 96
    %v825 = vpop.permute.xlu0 %824
    %826 = vrot.lane.b32.xlu0 %v821, 96
    %v827 = vpop.permute.xlu0 %826
    %v830 = vadd.f32 %v810, %v825
    %v831 = vadd.f32 %v811, %v827
    %v832 = vtanh.pop %v830
    %v833 = vtanh.pop %v831
    %836 = vrot.lane.b32.xlu0 %v832, 64
    %v837 = vpop.permute.xlu0 %836
    %838 = vrot.lane.b32.xlu0 %v833, 64
    %v839 = vpop.permute.xlu0 %838
    %v842 = vmul.f32 %v802, %v837
    %v843 = vmul.f32 %v803, %v839
    %v844 = vpack.c.bf16 %v842, %v842
    %v845 = vpack.c.bf16 %v843, %v843
    %v848 = vunpack.c.l.b16 %v844
    %v849 = vunpack.c.l.b16 %v845
    %v850 = vrot.slane %v848, 5
    %v851 = vrot.slane %v849, 4
    %v852 = vsel %vm253, %v851, %v850
    %v853 = vpack.c.b16 %v852, %v852
    %854 = vrot.lane.b32.xlu0 %v853, 64
    %v855 = vpop.permute.xlu0 %854
    %v857 = vsel %vm144, %v855, 0
    %859 = vmatprep.subr.bf16.mxu0 0
    %860 = vmatpush1.bf16.msra.mxu0 %v140
    %861 = vmatprep.subr.bf16.mxu0 0
    %862 = vmatpush1.bf16.msra.mxu0 %v141
    %863 = vmatprep.subr.bf16.mxu0 0
    %864 = vmatpush1.bf16.msra.mxu0 0
    %865 = vmatprep.subr.bf16.mxu0 0
    %866 = vmatpush1.bf16.msra.mxu0 0
    %867 = vmatprep.subr.bf16.mxu0 0
    %868 = vmatpush1.bf16.msra.mxu0 0
    %869 = vmatprep.subr.bf16.mxu0 0
    %870 = vmatpush1.bf16.msra.mxu0 0
    %871 = vmatprep.subr.bf16.mxu0 0
    %872 = vmatpush1.bf16.msra.mxu0 0
    %873 = vmatprep.subr.bf16.mxu0 0
    %874 = vmatpush1.bf16.msra.mxu0 0
    %875 = vmatprep.subr.bf16.mxu0 0
    %876 = vmatpush1.bf16.msra.mxu0 0
    %877 = vmatprep.subr.bf16.mxu0 0
    %878 = vmatpush1.bf16.msra.mxu0 0
    %879 = vmatprep.subr.bf16.mxu0 0
    %880 = vmatpush1.bf16.msra.mxu0 0
    %881 = vmatprep.subr.bf16.mxu0 0
    %882 = vmatpush1.bf16.msra.mxu0 0
    %883 = vmatprep.subr.bf16.mxu0 0
    %884 = vmatpush1.bf16.msra.mxu0 0
    %885 = vmatprep.subr.bf16.mxu0 0
    %886 = vmatpush1.bf16.msra.mxu0 0
    %887 = vmatprep.subr.bf16.mxu0 0
    %888 = vmatpush1.bf16.msra.mxu0 0
    %889 = vmatprep.subr.bf16.mxu0 0
    %890 = vmatpush1.bf16.msra.mxu0 0
    %891 = vmatprep.mubr.bf16.mxu0 0
    %892 = vmatmul.mubr.bf16.gmra.mrb[0].mxu0 %v857
    %v893 = vpop.f32.mrb[0].mxu0
    %v894 = vadd.f32 0.0, %v893
    %v895 = vpop.f32.mrb[0].mxu0
    %v896 = vpop.f32.mrb[0].mxu0
    %v897 = vpop.f32.mrb[0].mxu0
    %898 = vdwg.mxu0
    %v900 = vrot.slane %v894, 2
    %v901 = vrot.slane %v894, 3
    %v904 = vadd.f32 %v121, %v900
    %v905 = vadd.f32 %v124, %v901
    %v906 = vmul.f32 %v904, %v130
    %v907 = vmul.f32 %v905, %v130
    %v908 = vxor.u32 %v906, 2147483648
    %v909 = vxor.u32 %v907, 2147483648
    %v910 = vmul.f32 %v908, 1.442695
    %v911 = vpow.pop %v910
    %v912 = vmul.f32 %v909, 1.442695
    %v913 = vpow.pop %v912
    %v914 = vadd.f32 %v911, 1.0
    %v915 = vadd.f32 %v913, 1.0
    %v916 = vrcp.pop %v914
    %v917 = vmul.f32 1.0, %v916
    %v918 = vrcp.pop %v915
    %v919 = vmul.f32 1.0, %v918
    %v920 = vmul.f32 %v917, %v130
    %v921 = vmul.f32 %v919, %v130
    %v922 = vadd.f32 %v920, %v131
    %v923 = vadd.f32 %v921, %v131
    %v926 = vrot.slane %v830, 7
    %v927 = vrot.slane %v831, 7
    %v930 = vmul.f32 %v922, %v926
    %v931 = vmul.f32 %v923, %v927
    %934 = vrot.lane.b32.xlu0 %v922, 64
    %v935 = vpop.permute.xlu0 %934
    %936 = vrot.lane.b32.xlu0 %v923, 64
    %v937 = vpop.permute.xlu0 %936
    %v940 = vmul.f32 %v922, %v935
    %v941 = vmul.f32 %v923, %v937
    %944 = vrot.lane.b32.xlu0 %v940, 96
    %v945 = vpop.permute.xlu0 %944
    %946 = vrot.lane.b32.xlu0 %v941, 96
    %v947 = vpop.permute.xlu0 %946
    %v950 = vadd.f32 %v930, %v945
    %v951 = vadd.f32 %v931, %v947
    %v952 = vtanh.pop %v950
    %v953 = vtanh.pop %v951
    %956 = vrot.lane.b32.xlu0 %v952, 64
    %v957 = vpop.permute.xlu0 %956
    %958 = vrot.lane.b32.xlu0 %v953, 64
    %v959 = vpop.permute.xlu0 %958
    %v962 = vmul.f32 %v922, %v957
    %v963 = vmul.f32 %v923, %v959
    %v964 = vpack.c.bf16 %v962, %v962
    %v965 = vpack.c.bf16 %v963, %v963
    %v968 = vunpack.c.l.b16 %v964
    %v969 = vunpack.c.l.b16 %v965
    %v970 = vrot.slane %v968, 6
    %v971 = vrot.slane %v969, 5
    %v972 = vsel %vm253, %v971, %v970
    %v973 = vpack.c.b16 %v972, %v972
    %974 = vrot.lane.b32.xlu0 %v973, 64
    %v975 = vpop.permute.xlu0 %974
    %v977 = vsel %vm144, %v975, 0
    %979 = vmatprep.subr.bf16.mxu0 0
    %980 = vmatpush1.bf16.msra.mxu0 %v140
    %981 = vmatprep.subr.bf16.mxu0 0
    %982 = vmatpush1.bf16.msra.mxu0 %v141
    %983 = vmatprep.subr.bf16.mxu0 0
    %984 = vmatpush1.bf16.msra.mxu0 0
    %985 = vmatprep.subr.bf16.mxu0 0
    %986 = vmatpush1.bf16.msra.mxu0 0
    %987 = vmatprep.subr.bf16.mxu0 0
    %988 = vmatpush1.bf16.msra.mxu0 0
    %989 = vmatprep.subr.bf16.mxu0 0
    %990 = vmatpush1.bf16.msra.mxu0 0
    %991 = vmatprep.subr.bf16.mxu0 0
    %992 = vmatpush1.bf16.msra.mxu0 0
    %993 = vmatprep.subr.bf16.mxu0 0
    %994 = vmatpush1.bf16.msra.mxu0 0
    %995 = vmatprep.subr.bf16.mxu0 0
    %996 = vmatpush1.bf16.msra.mxu0 0
    %997 = vmatprep.subr.bf16.mxu0 0
    %998 = vmatpush1.bf16.msra.mxu0 0
    %999 = vmatprep.subr.bf16.mxu0 0
    %1000 = vmatpush1.bf16.msra.mxu0 0
    %1001 = vmatprep.subr.bf16.mxu0 0
    %1002 = vmatpush1.bf16.msra.mxu0 0
    %1003 = vmatprep.subr.bf16.mxu0 0
    %1004 = vmatpush1.bf16.msra.mxu0 0
    %1005 = vmatprep.subr.bf16.mxu0 0
    %1006 = vmatpush1.bf16.msra.mxu0 0
    %1007 = vmatprep.subr.bf16.mxu0 0
    %1008 = vmatpush1.bf16.msra.mxu0 0
    %1009 = vmatprep.subr.bf16.mxu0 0
    %1010 = vmatpush1.bf16.msra.mxu0 0
    %1011 = vmatprep.mubr.bf16.mxu0 0
    %1012 = vmatmul.mubr.bf16.gmra.mrb[0].mxu0 %v977
    %v1013 = vpop.f32.mrb[0].mxu0
    %v1014 = vadd.f32 0.0, %v1013
    %v1015 = vpop.f32.mrb[0].mxu0
    %v1016 = vpop.f32.mrb[0].mxu0
    %v1017 = vpop.f32.mrb[0].mxu0
    %1018 = vdwg.mxu0
    %v1020 = vrot.slane %v1014, 1
    %v1021 = vrot.slane %v1014, 2
    %v1024 = vadd.f32 %v121, %v1020
    %v1025 = vadd.f32 %v124, %v1021
    %v1026 = vmul.f32 %v1024, %v130
    %v1027 = vmul.f32 %v1025, %v130
    %v1028 = vxor.u32 %v1026, 2147483648
    %v1029 = vxor.u32 %v1027, 2147483648
    %v1030 = vmul.f32 %v1028, 1.442695
    %v1031 = vpow.pop %v1030
    %v1032 = vmul.f32 %v1029, 1.442695
    %v1033 = vpow.pop %v1032
    %v1034 = vadd.f32 %v1031, 1.0
    %v1035 = vadd.f32 %v1033, 1.0
    %v1036 = vrcp.pop %v1034
    %v1037 = vmul.f32 1.0, %v1036
    %v1038 = vrcp.pop %v1035
    %v1039 = vmul.f32 1.0, %v1038
    %v1040 = vmul.f32 %v1037, %v130
    %v1041 = vmul.f32 %v1039, %v130
    %v1042 = vadd.f32 %v1040, %v131
    %v1043 = vadd.f32 %v1041, %v131
    %v1046 = vrot.slane %v950, 7
    %v1047 = vrot.slane %v951, 7
    %v1050 = vmul.f32 %v1042, %v1046
    %v1051 = vmul.f32 %v1043, %v1047
    %1054 = vrot.lane.b32.xlu0 %v1042, 64
    %v1055 = vpop.permute.xlu0 %1054
    %1056 = vrot.lane.b32.xlu0 %v1043, 64
    %v1057 = vpop.permute.xlu0 %1056
    %v1060 = vmul.f32 %v1042, %v1055
    %v1061 = vmul.f32 %v1043, %v1057
    %1064 = vrot.lane.b32.xlu0 %v1060, 96
    %v1065 = vpop.permute.xlu0 %1064
    %1066 = vrot.lane.b32.xlu0 %v1061, 96
    %v1067 = vpop.permute.xlu0 %1066
    %v1070 = vadd.f32 %v1050, %v1065
    %v1071 = vadd.f32 %v1051, %v1067
    %v1072 = vtanh.pop %v1070
    %v1073 = vtanh.pop %v1071
    %1076 = vrot.lane.b32.xlu0 %v1072, 64
    %v1077 = vpop.permute.xlu0 %1076
    %1078 = vrot.lane.b32.xlu0 %v1073, 64
    %v1079 = vpop.permute.xlu0 %1078
    %v1082 = vmul.f32 %v1042, %v1077
    %v1083 = vmul.f32 %v1043, %v1079
    %v1086 = vrot.slane %v1083, 7
    %1087 = vrot.lane.b32.xlu0 %v1082, 64
    %v1088 = vpop.permute.xlu0 %1087
    %1089 = vrot.lane.b32.xlu0 %v1086, 64
    %v1090 = vpop.permute.xlu0 %1089
    %vm1093 = vcmask 261127
    %1094 = vst.msk [vmem:[#allocation8 - $0x7] sm:$0x80] %vm1093, %v1088
    %vm1095 = vcmask 253952
    %1096 = vst.msk [vmem:[#allocation8 + $0x1] sm:$0x1] %vm1095, %v1090
    // Predicated region
    $region30: #{tpu_custom_call.1} parent=1 // pred_check
      _
    $region31: #{tpu_custom_call.1} parent=1 // pred_check_branch
      %1098 = sbr.rel (0) target = $region33
    $region32: #{tpu_custom_call.1} parent=1 // pred_region
      %s1100 = ssub.s32 32, 32
      %1101 = vsyncadd [#allocation4], %s1100
      %s1103 = sshll.u32 [#allocation8], 4
      %s1104 = int_to_ptr.vmem [resolvable:$true] %s1103
      %1106 = dma.vmem_to_hbm [thread:$0]  %s1104, 32, %s4, [#allocation4]
    $region33: #{tpu_custom_call.1} parent=1 // pred_fallthru
      _
    // Predicated region
    $region34: #{tpu_custom_call.1} parent=1 // pred_check
      _
    $region35: #{tpu_custom_call.1} parent=1 // pred_check_branch
      %1108 = sbr.rel (0) target = $region37
    $region36: #{tpu_custom_call.1} parent=1 // pred_region
      %1109 = dma.done [#allocation4], 32
    $region37: #{tpu_custom_call.1} parent=1 // pred_fallthru
      _
    %1110 = vsyncpa [#allocation3], 1
    %1111 = vsyncpa [#allocation6], 1
    %1112 = vsyncpa [#allocation4], 1

</llo_original>
